<compile_context>
chip_gen: v7x
topology: tpu7x:2x2x1
jax: 0.10.0
libtpu: 0.0.40
codegen_flags: <defaults>
</compile_context>

<pallas_src>
import functools

import jax
import jax.numpy as jnp
from jax import lax
from jax.experimental import pallas as pl
from jax.experimental.pallas import tpu as pltpu


_N_LANES = 128
_TARGET_BLOCK_BYTES = 4 * 1024 * 1024   # ~4 MiB per input block
_FAST_PATH_BYTES = 1 * 1024 * 1024      # below this, plain JAX wins


def _round_up(x, m):
    return ((x + m - 1) // m) * m


def _rmspe_kernel(t_ref, p_ref, o_ref, *, tm, spp, n_valid_rows, full_blocks,
                  need_mask, approx_reciprocal):
    """Accumulate sum(((t - p)/t)^2) of one (tm, 128) block into o_ref.

    o_ref is the per-core (8, 128) partial-sum block; it stays VMEM-resident
    for the whole j ("arbitrary") sweep because its block index depends only
    on i.  On the last j step it is collapsed to a scalar in-kernel (fused
    epilogue) and broadcast back into the block.
    """
    i = pl.program_id(0)
    j = pl.program_id(1)

    @pl.when(j == 0)
    def _init():
        o_ref[...] = jnp.zeros_like(o_ref)

    t = t_ref[...].astype(jnp.float32)
    p = p_ref[...].astype(jnp.float32)
    if approx_reciprocal:
        rel = (t - p) * pl.reciprocal(t, approx=True)
    else:
        rel = (t - p) / t
    sq = rel * rel                                       # (tm, 128)

    def _accumulate(vals):
        # Leading-axis reduction -> pure VPU vreg adds in the steady state.
        o_ref[...] += vals.reshape(tm // 8, 8, _N_LANES).sum(axis=0)

    if need_mask:
        logical_blk = i * spp + j

        @pl.when(logical_blk < full_blocks)
        def _full_block():
            _accumulate(sq)

        @pl.when(logical_blk >= full_blocks)
        def _tail_block():
            row = (logical_blk * tm
                   + lax.broadcasted_iota(jnp.int32, (tm, _N_LANES), 0))
            _accumulate(jnp.where(row < n_valid_rows, sq, 0.0))
    else:
        _accumulate(sq)

    @pl.when(j == spp - 1)
    def _finalize():
        # Fused epilogue: one-off XLU reduce of the 1024 per-lane partials.
        o_ref[...] = jnp.broadcast_to(jnp.sum(o_ref[...]), o_ref.shape)


def rmspe_loss_pallas(targets: jax.Array, predictions: jax.Array, *,
                      block_rows=None, force_kernel: bool = False,
                      approx_reciprocal: bool = False) -> jax.Array:
    """sqrt(mean(((targets - predictions) / targets)**2)) computed in Pallas."""
    assert targets.shape == predictions.shape
    if not jnp.issubdtype(targets.dtype, jnp.floating):
        targets = targets.astype(jnp.float32)
    if not jnp.issubdtype(predictions.dtype, jnp.floating):
        predictions = predictions.astype(jnp.float32)

    total = int(targets.size)
    if total == 0:
        return jnp.float32(jnp.nan)          # mean of empty, like torch

    itemsize = max(targets.dtype.itemsize, predictions.dtype.itemsize)

    # ---- Small-input fast path (typical loss tensors): plain fused XLA. -----
    if not force_kernel and total * itemsize < _FAST_PATH_BYTES:
        t32 = targets.astype(jnp.float32)
        p32 = predictions.astype(jnp.float32)
        return jnp.sqrt(jnp.mean(jnp.square((t32 - p32) / t32)))

    # ---- Lane-dense (rows, 128) view; free reshape when total % 128 == 0. ---
    t_flat = targets.reshape(-1)
    p_flat = predictions.reshape(-1)
    rows = _round_up(total, _N_LANES) // _N_LANES
    rem = rows * _N_LANES - total
    if rem > 0:
        # Ragged sub-row tail (< 128 elements): pad with 1.0 so (1-1)/1 = 0.
        # The mean still divides by the ORIGINAL element count.  This is the
        # only remaining pad and only triggers for non-128-divisible sizes.
        t_flat = jnp.pad(t_flat, (0, rem), constant_values=1)
        p_flat = jnp.pad(p_flat, (0, rem), constant_values=1)
    t2d = t_flat.reshape(rows, _N_LANES)
    p2d = p_flat.reshape(rows, _N_LANES)

    # ---- Tiling. -------------------------------------------------------------
    row_mult = 8 * max(1, 4 // itemsize)      # 8 f32, 16 bf16/f16, 32 for 8-bit
    if block_rows is None:
        block_rows = _TARGET_BLOCK_BYTES // (_N_LANES * itemsize)
    tm = min(int(block_rows), _round_up(rows, row_mult))
    tm = max(row_mult, _round_up(tm, row_mult))
    n_blocks = -(-rows // tm)

    # Two "parallel" slices of the block axis when there is enough work (lets
    # a megacore part shard it; harmless — same total steps — on 1-TC chips).
    n_par = 2 if n_blocks >= 4 else 1
    spp = -(-n_blocks // n_par)               # steps per parallel slice

    full_blocks = rows // tm                  # blocks with no invalid rows
    need_mask = (n_par * spp * tm != rows)

    if n_par * spp == n_blocks:
        in_map = lambda i, j: (i * spp + j, 0)
    else:
        # Grid over-covers the block range: clamp the DMA index; the
        # over-covered steps are fully masked out in-kernel.
        last_blk = n_blocks - 1
        in_map = lambda i, j: (jnp.minimum(i * spp + j, last_blk), 0)

    kernel = functools.partial(
        _rmspe_kernel, tm=tm, spp=spp, n_valid_rows=rows,
        full_blocks=full_blocks, need_mask=need_mask,
        approx_reciprocal=approx_reciprocal)

    cost = pl.CostEstimate(
        flops=4 * total,
        transcendentals=total,                # the divide
        bytes_accessed=total * (targets.dtype.itemsize
                                + predictions.dtype.itemsize)
        + n_par * 8 * _N_LANES * 4,
    )

    partial_out = pl.pallas_call(
        kernel,
        out_shape=jax.ShapeDtypeStruct((n_par, 8, _N_LANES), jnp.float32),
        grid_spec=pltpu.PrefetchScalarGridSpec(
            num_scalar_prefetch=0,
            grid=(n_par, spp),
            in_specs=[
                pl.BlockSpec((tm, _N_LANES), in_map),
                pl.BlockSpec((tm, _N_LANES), in_map),
            ],
            out_specs=pl.BlockSpec((None, 8, _N_LANES), lambda i, j: (i, 0, 0)),
        ),
        compiler_params=pltpu.CompilerParams(
            dimension_semantics=("parallel", "arbitrary"),
            vmem_limit_bytes=32 * 1024 * 1024,
        ),
        cost_estimate=cost,
    )(t2d, p2d)

    # Per-core totals were already reduced in-kernel: only scalar work remains.
    total_sq = jnp.sum(partial_out[:, 0, 0])
    return jnp.sqrt(total_sq / jnp.float32(total))


class RMSPELossPallas:
    """Mirrors ludwig's RMSPELoss (a parameter-free nn.Module)."""

    def __init__(self, **kwargs):
        pass  # no parameters

    def __call__(self, input, target, **kwargs):
        # LogitsLoss would unwrap {LOGITS: ...} dicts; accept plain arrays too.
        if isinstance(input, dict) and "logits" in input:
            input = input["logits"]
        return rmspe_loss_pallas(target, input, **kwargs)


if __name__ == "__main__":
    key = jax.random.PRNGKey(0)
    k1, k2, k3, k4, k5, k6, k7, k8 = jax.random.split(key, 8)

    loss_fn = RMSPELossPallas()

    def ref_loss(t, p):
        t32 = t.astype(jnp.float32)
        p32 = p.astype(jnp.float32)
        return jnp.sqrt(jnp.mean(jnp.square((t32 - p32) / t32)))

    # 1) Small demo shape, forced through the Pallas kernel (single block).
    shape = (2, 4, 16, 16)                    # 2048 elements -> (16, 128) slab
    t1 = jax.random.uniform(k1, shape, jnp.float32, minval=1.0, maxval=2.0)
    p1 = t1 + 0.1 * jax.random.normal(k2, shape, jnp.float32)
    out1 = loss_fn(p1, t1, force_kernel=True)
    jax.block_until_ready(out1)
    assert jnp.allclose(out1, ref_loss(t1, p1), rtol=1e-5, atol=1e-6), (out1,)

    # 2) Awkward non-128-divisible shape -> tiny tail pad + row masking path.
    t2 = jax.random.uniform(k3, (3, 7, 5), jnp.float32, minval=1.0, maxval=2.0)
    p2 = t2 + 0.05 * jax.random.normal(k4, (3, 7, 5), jnp.float32)
    out2 = rmspe_loss_pallas(t2, p2, force_kernel=True)
    jax.block_until_ready(out2)
    assert jnp.allclose(out2, ref_loss(t2, p2), rtol=1e-5, atol=1e-6), (out2,)

    # 3) Multi-block + 2-way "parallel" split with an odd block count
    #    (exercises the clamped index map and the fully-masked overflow step).
    t3 = jax.random.uniform(k5, (40, 128), jnp.float32, minval=1.0, maxval=2.0)
    p3 = t3 + 0.1 * jax.random.normal(k6, (40, 128), jnp.float32)
    out3 = rmspe_loss_pallas(t3, p3, force_kernel=True, block_rows=8)
    jax.block_until_ready(out3)
    assert jnp.allclose(out3, ref_loss(t3, p3), rtol=1e-5, atol=1e-6), (out3,)

    # 4) bf16 inputs: in-kernel upcast, 16-row packed tile, multi-step grid.
    t4 = jax.random.uniform(k7, (4, 16, 64), jnp.float32,
                            minval=1.0, maxval=2.0).astype(jnp.bfloat16)
    p4 = (t4.astype(jnp.float32)
          + 0.1 * jax.random.normal(k8, (4, 16, 64), jnp.float32)
          ).astype(jnp.bfloat16)
    out4 = rmspe_loss_pallas(t4, p4, force_kernel=True, block_rows=16)
    jax.block_until_ready(out4)
    assert jnp.allclose(out4, ref_loss(t4, p4), rtol=1e-3, atol=1e-4), (out4,)

    # 5) Default call on a small input -> plain-JAX fast path.
    out5 = loss_fn(p1, t1)
    jax.block_until_ready(out5)
    assert jnp.allclose(out5, ref_loss(t1, p1), rtol=1e-5, atol=1e-6), (out5,)

    print("KERNEL_OK")
</pallas_src>

<mosaic_0001>
module attributes {stable_mosaic.version = 11 : i64} {
  func.func @_rmspe_kernel(%arg0: i32, %arg1: i32, %arg2: memref<16x128xf32, #tpu.memory_space<vmem>>, %arg3: memref<16x128xf32, #tpu.memory_space<vmem>>, %arg4: memref<1x8x128xf32, #tpu.memory_space<vmem>>) attributes {dimension_semantics = [#tpu.dimension_semantics<parallel>, #tpu.dimension_semantics<arbitrary>], iteration_bounds = array<i64: 1, 1>, scalar_prefetch = 0 : i64, scratch_operands = 0 : i64, tpu.core_type = #tpu.core_type<tc>, window_params = [{transform_indices = @transform_0, window_bounds = array<i64: 16, 128>}, {transform_indices = @transform_1, window_bounds = array<i64: 16, 128>}, {transform_indices = @transform_2, window_bounds = array<i64: 1, 8, 128>}]} {
    %c0_i32 = arith.constant 0 : i32
    %0 = arith.cmpi eq, %arg1, %c0_i32 : i32
    %1 = arith.extui %0 : i1 to i32
    %c0_i32_0 = arith.constant 0 : i32
    %2 = arith.cmpi ne, %1, %c0_i32_0 : i32
    scf.if %2 {
      %cst_12 = arith.constant 0.000000e+00 : f32
      %19 = vector.broadcast %cst_12 : f32 to vector<8x128xf32>
      %c0_13 = arith.constant 0 : index
      %c0_14 = arith.constant 0 : index
      %c0_15 = arith.constant 0 : index
      %20 = vector.load %arg4[%c0_13, %c0_14, %c0_15] : memref<1x8x128xf32, #tpu.memory_space<vmem>>, vector<1x8x128xf32>
      %21 = vector.shape_cast %20 : vector<1x8x128xf32> to vector<8x128xf32>
      %22 = vector.shape_cast %19 : vector<8x128xf32> to vector<1x8x128xf32>
      tpu.vector_store %arg4[%c0_13, %c0_14, %c0_15], %22 {strides = array<i32>} : memref<1x8x128xf32, #tpu.memory_space<vmem>>, vector<1x8x128xf32>,
    } else {
    }
    %c0 = arith.constant 0 : index
    %c0_1 = arith.constant 0 : index
    %3 = vector.load %arg2[%c0, %c0_1] : memref<16x128xf32, #tpu.memory_space<vmem>>, vector<16x128xf32>
    %c0_2 = arith.constant 0 : index
    %c0_3 = arith.constant 0 : index
    %4 = vector.load %arg3[%c0_2, %c0_3] : memref<16x128xf32, #tpu.memory_space<vmem>>, vector<16x128xf32>
    %5 = arith.subf %3, %4 : vector<16x128xf32>
    %6 = arith.divf %5, %3 : vector<16x128xf32>
    %7 = arith.mulf %6, %6 : vector<16x128xf32>
    %c0_4 = arith.constant 0 : index
    %c0_5 = arith.constant 0 : index
    %c0_6 = arith.constant 0 : index
    %8 = vector.load %arg4[%c0_4, %c0_5, %c0_6] : memref<1x8x128xf32, #tpu.memory_space<vmem>>, vector<1x8x128xf32>
    %9 = vector.shape_cast %8 : vector<1x8x128xf32> to vector<8x128xf32>
    %10 = vector.shape_cast %7 : vector<16x128xf32> to vector<2x8x128xf32>
    %cst = arith.constant dense<0.000000e+00> : vector<8x128xf32>
    %11 = vector.multi_reduction <add>, %10, %cst [0] : vector<2x8x128xf32> to vector<8x128xf32>
    %12 = arith.addf %9, %11 : vector<8x128xf32>
    %c0_7 = arith.constant 0 : index
    %c0_8 = arith.constant 0 : index
    %c0_9 = arith.constant 0 : index
    %13 = vector.load %arg4[%c0_7, %c0_8, %c0_9] : memref<1x8x128xf32, #tpu.memory_space<vmem>>, vector<1x8x128xf32>
    %14 = vector.shape_cast %13 : vector<1x8x128xf32> to vector<8x128xf32>
    %15 = vector.shape_cast %12 : vector<8x128xf32> to vector<1x8x128xf32>
    tpu.vector_store %arg4[%c0_7, %c0_8, %c0_9], %15 {strides = array<i32>} : memref<1x8x128xf32, #tpu.memory_space<vmem>>, vector<1x8x128xf32>,
    %c0_i32_10 = arith.constant 0 : i32
    %16 = arith.cmpi eq, %arg1, %c0_i32_10 : i32
    %17 = arith.extui %16 : i1 to i32
    %c0_i32_11 = arith.constant 0 : i32
    %18 = arith.cmpi ne, %17, %c0_i32_11 : i32
    scf.if %18 {
      %c0_12 = arith.constant 0 : index
      %c0_13 = arith.constant 0 : index
      %c0_14 = arith.constant 0 : index
      %19 = vector.load %arg4[%c0_12, %c0_13, %c0_14] : memref<1x8x128xf32, #tpu.memory_space<vmem>>, vector<1x8x128xf32>
      %20 = vector.shape_cast %19 : vector<1x8x128xf32> to vector<8x128xf32>
      %21 = vector.shape_cast %20 : vector<8x128xf32> to vector<1x8x128xf32>
      %cst_15 = arith.constant dense<0.000000e+00> : vector<1xf32>
      %22 = vector.multi_reduction <add>, %21, %cst_15 [1, 2] : vector<1x8x128xf32> to vector<1xf32>
      %23 = vector.shape_cast %22 : vector<1xf32> to vector<1x1x1xf32>
      %24 = vector.extract %23[0, 0, 0] : f32 from vector<1x1x1xf32>
      %25 = vector.broadcast %24 : f32 to vector<8x128xf32>
      %c0_16 = arith.constant 0 : index
      %c0_17 = arith.constant 0 : index
      %c0_18 = arith.constant 0 : index
      %26 = vector.load %arg4[%c0_16, %c0_17, %c0_18] : memref<1x8x128xf32, #tpu.memory_space<vmem>>, vector<1x8x128xf32>
      %27 = vector.shape_cast %26 : vector<1x8x128xf32> to vector<8x128xf32>
      %28 = vector.shape_cast %25 : vector<8x128xf32> to vector<1x8x128xf32>
      tpu.vector_store %arg4[%c0_16, %c0_17, %c0_18], %28 {strides = array<i32>} : memref<1x8x128xf32, #tpu.memory_space<vmem>>, vector<1x8x128xf32>,
    } else {
    }
    return
  }
  func.func @transform_0(%arg0: i32, %arg1: i32) -> (i32, i32) {
    %c1_i32 = arith.constant 1 : i32
    %0 = arith.muli %arg0, %c1_i32 : i32
    %1 = arith.addi %0, %arg1 : i32
    %c0_i32 = arith.constant 0 : i32
    %c0_i32_0 = arith.constant 0 : i32
    return %1, %c0_i32 : i32, i32
  }
  func.func @transform_1(%arg0: i32, %arg1: i32) -> (i32, i32) {
    %c1_i32 = arith.constant 1 : i32
    %0 = arith.muli %arg0, %c1_i32 : i32
    %1 = arith.addi %0, %arg1 : i32
    %c0_i32 = arith.constant 0 : i32
    %c0_i32_0 = arith.constant 0 : i32
    return %1, %c0_i32 : i32, i32
  }
  func.func @transform_2(%arg0: i32, %arg1: i32) -> (i32, i32, i32) {
    %c0_i32 = arith.constant 0 : i32
    %c0_i32_0 = arith.constant 0 : i32
    %c0_i32_1 = arith.constant 0 : i32
    return %arg0, %c0_i32, %c0_i32_0 : i32, i32, i32
  }
}

</mosaic_0001>

<llo_original>
// kernel: tpu_custom_call.1
$region0: #{tpu_custom_call.1}
  #allocation0 [shape = 'u32[]', space=smem, size = 0x4, offset = 0x4, fixed_abs, tag = 'smem constant byte address 0x4 - core index']
  #allocation1 [shape = 'u32[144,128]{1,0:T(1,128)}', space=vmem, size = 0x12000, scoped, tag = 'internal scratch']
  %s0 = inlined_call_operand.hbm [shape: f32[16,128], index: 0, kind: input, shape index: {}]
  %s1 = inlined_call_operand.hbm [shape: f32[16,128], index: 1, kind: input, shape index: {}]
  %s2 = inlined_call_operand.hbm [shape: f32[1,8,128], index: 2, kind: output, shape index: {}]
  %s3 = sld [smem:[#allocation0]]
  $region34: #{tpu_custom_call.1} parent=0
    _
  %s5 = ssub.s32 1, %s3
  %s6 = scalar_select 0, %s5, %s3
  $region1: #{tpu_custom_call.1} parent=0
    #allocation2 [shape = 'u8[8192]{0}', space=vmem, size = 0x2000, scoped, tag = 'input window, operand 0, single buffered']
    #allocation3 [shape = 's32[1]{0}', space=sflag, size = 0x4, scoped, tag = 'scoped memory for tpu_custom_call.1']
    #allocation4 [shape = 's32[1]{0}', space=sflag, size = 0x4, scoped, tag = 'scoped memory for tpu_custom_call.1']
    #allocation5 [shape = 'u8[8192]{0}', space=vmem, size = 0x2000, scoped, tag = 'input window, operand 1, single buffered']
    #allocation6 [shape = 's32[1]{0}', space=sflag, size = 0x4, scoped, tag = 'scoped memory for tpu_custom_call.1']
    #allocation7 [shape = 'u8[4096]{0}', space=vmem, size = 0x1000, scoped, tag = 'output window, operand 0, single buffered']
    %7 = vsyncpa [#allocation3], 0
    %8 = vsyncpa [#allocation6], 0
    %9 = vsyncpa [#allocation4], 0
    // Predicated region
    $region2: #{tpu_custom_call.1} parent=1 // pred_check
      _
    $region3: #{tpu_custom_call.1} parent=1 // pred_check_branch
      %11 = sbr.rel (0) target = $region5
    $region4: #{tpu_custom_call.1} parent=1 // pred_region
      %s12 = sadd.s32 0, 0
      %s13 = smul.u32 2, %s12
      %s15 = ssub.s32 256, 256
      %16 = vsyncadd [#allocation3], %s15
      %s17 = smul.addr %s13, 128
      %s18 = scalar_lea.hbm %s0, %s17
      %s19 = sshll.u32 [#allocation2], 4
      %s20 = int_to_ptr.vmem [resolvable:$true] %s19
      %25 = dma.hbm_to_vmem [thread:$0]  %s18, 256, %s20, [#allocation3], 128, 128, 8
    $region5: #{tpu_custom_call.1} parent=1 // pred_fallthru
      _
    // Predicated region
    $region6: #{tpu_custom_call.1} parent=1 // pred_check
      _
    $region7: #{tpu_custom_call.1} parent=1 // pred_check_branch
      %27 = sbr.rel (0) target = $region9
    $region8: #{tpu_custom_call.1} parent=1 // pred_region
      %s28 = sadd.s32 0, 0
      %s29 = smul.u32 2, %s28
      %s31 = ssub.s32 256, 256
      %32 = vsyncadd [#allocation6], %s31
      %s33 = smul.addr %s29, 128
      %s34 = scalar_lea.hbm %s1, %s33
      %s35 = sshll.u32 [#allocation5], 4
      %s36 = int_to_ptr.vmem [resolvable:$true] %s35
      %41 = dma.hbm_to_vmem [thread:$0]  %s34, 256, %s36, [#allocation6], 128, 128, 8
    $region9: #{tpu_custom_call.1} parent=1 // pred_fallthru
      _
    // Predicated region
    $region10: #{tpu_custom_call.1} parent=1 // pred_check
      _
    $region11: #{tpu_custom_call.1} parent=1 // pred_check_branch
      %43 = sbr.rel (0) target = $region13
    $region12: #{tpu_custom_call.1} parent=1 // pred_region
      %44 = dma.done [#allocation3], 256
    $region13: #{tpu_custom_call.1} parent=1 // pred_fallthru
      _
    // Predicated region
    $region14: #{tpu_custom_call.1} parent=1 // pred_check
      _
    $region15: #{tpu_custom_call.1} parent=1 // pred_check_branch
      %46 = sbr.rel (0) target = $region17
    $region16: #{tpu_custom_call.1} parent=1 // pred_region
      %47 = dma.done [#allocation6], 256
    $region17: #{tpu_custom_call.1} parent=1 // pred_fallthru
      _
    %s48 = sadd.s32 0, 0
    %s49 = smul.u32 2, %s48
    %s50 = sadd.s32 0, 0
    %s51 = smul.u32 2, %s50
    %p52 = scmp.eq.s32.totalorder 0, 0
    // Predicated region
    $region18: #{tpu_custom_call.1} parent=1 // pred_check
      %p53 = pneg %p52
    $region19: #{tpu_custom_call.1} parent=1 // pred_check_branch
      %55 = sbr.rel (%p53) target = $region21
    $region20: #{tpu_custom_call.1} parent=1 // pred_region
      %56 = vst [vmem:[#allocation7] sm:$0xff] 0.0
    $region21: #{tpu_custom_call.1} parent=1 // pred_fallthru
      _
    %v57 = vld [vmem:[#allocation2] sm:$0xff]
    %v58 = vld [vmem:[#allocation2 + $0x8] sm:$0xff]
    %v59 = vld [vmem:[#allocation5] sm:$0xff]
    %v60 = vld [vmem:[#allocation5 + $0x8] sm:$0xff]
    %v61 = vsub.f32 %v57, %v59
    %v62 = vsub.f32 %v58, %v60
    %v63 = vrcp.pop %v57
    %v64 = vmul.f32 %v61, %v63
    %v65 = vrcp.pop %v58
    %v66 = vmul.f32 %v62, %v65
    %v67 = vmul.f32 %v64, %v64
    %v68 = vmul.f32 %v66, %v66
    %v69 = vld [vmem:[#allocation7] sm:$0xff]
    %v70 = vadd.f32 %v67, %v68
    %v71 = vadd.f32 %v69, %v70
    %72 = vst [vmem:[#allocation7] sm:$0xff] %v71
    // Predicated region
    $region22: #{tpu_custom_call.1} parent=1 // pred_check
      %p73 = pneg %p52
    $region23: #{tpu_custom_call.1} parent=1 // pred_check_branch
      %75 = sbr.rel (%p73) target = $region25
    $region24: #{tpu_custom_call.1} parent=1 // pred_region
      %v76 = vld [vmem:[#allocation7] sm:$0xff]
      %77 = vadd.xlane.f32.xlu0 %v76
      %v78 = vpop.xlane.xlu0 %77
      %v79 = vrot.slane %v78, 4
      %v80 = vadd.f32 %v78, %v79
      %v81 = vrot.slane %v80, 2
      %v82 = vadd.f32 %v80, %v81
      %v83 = vrot.slane %v82, 1
      %v84 = vadd.f32 %v82, %v83
      %s85 = vtos %v84
      %v86 = vstv %s85
      %87 = vst [vmem:[#allocation7] sm:$0xff] %v86
    $region25: #{tpu_custom_call.1} parent=1 // pred_fallthru
      _
    // Predicated region
    $region26: #{tpu_custom_call.1} parent=1 // pred_check
      _
    $region27: #{tpu_custom_call.1} parent=1 // pred_check_branch
      %89 = sbr.rel (0) target = $region29
    $region28: #{tpu_custom_call.1} parent=1 // pred_region
      %s91 = ssub.s32 128, 128
      %92 = vsyncadd [#allocation4], %s91
      %s94 = sshll.u32 [#allocation7], 4
      %s95 = int_to_ptr.vmem [resolvable:$true] %s94
      %97 = dma.vmem_to_hbm [thread:$0]  %s95, 128, %s2, [#allocation4]
    $region29: #{tpu_custom_call.1} parent=1 // pred_fallthru
      _
    // Predicated region
    $region30: #{tpu_custom_call.1} parent=1 // pred_check
      _
    $region31: #{tpu_custom_call.1} parent=1 // pred_check_branch
      %99 = sbr.rel (0) target = $region33
    $region32: #{tpu_custom_call.1} parent=1 // pred_region
      %100 = dma.done [#allocation4], 128
    $region33: #{tpu_custom_call.1} parent=1 // pred_fallthru
      _
    %101 = vsyncpa [#allocation3], 1
    %102 = vsyncpa [#allocation6], 1
    %103 = vsyncpa [#allocation4], 1

</llo_original>
